<compile_context>
chip_gen: v7x
topology: tpu7x:2x2x1
jax: 0.10.0
libtpu: 0.0.40
codegen_flags: <defaults>
</compile_context>

<pallas_src>
import jax
import jax.numpy as jnp
from jax import lax
from jax.experimental import pallas as pl
from jax.experimental.pallas import tpu as pltpu

_LANES = 128
_SUBLANES = 8
_CHUNK_ROWS = 64                    # rows per in-kernel accumulation chunk
_NUM_CORES = 2                      # megacore split (v7x); harmless on 1-TC chips
_MAX_TILE_ROWS = 16384
_VMEM_INPUT_BUDGET = 24 << 20       # double-buffered input blocks
_VMEM_LIMIT_BYTES = 32 << 20        # raises v5e's 16 MiB default; <= v7x physical
_MIN_PALLAS_ELEMS = 1 << 17         # fall back to fused XLA below ~131k elements


def _round_up(x, m):
    return ((x + m - 1) // m) * m


def _make_kernel(masked, rows, tile_rows, chunk, steps_per_core, total_tiles):
    """Build the accumulation kernel (all sizing args are static Python ints)."""
    n_chunks = tile_rows // chunk
    # A masked path is only needed when the last tile is ragged or the
    # rectangular (cores x steps) grid has redundant steps.
    needs_partial = (rows % tile_rows != 0) or (
        _NUM_CORES * steps_per_core != total_tiles)

    def kernel(*refs):
        if masked:
            p_ref, t_ref, m_ref, acc_ref = refs
        else:
            p_ref, t_ref, acc_ref = refs
            m_ref = None
        c = pl.program_id(0)                 # core / parallel axis
        i = pl.program_id(1)                 # step within this core's range
        g = c * steps_per_core + i           # global tile index

        @pl.when(i == 0)
        def _():
            acc_ref[...] = jnp.zeros_like(acc_ref)

        def accumulate(mask_rows):
            if mask_rows:
                valid = rows - g * tile_rows     # rows of real data in this tile

            def body(ci, acc):
                start = pl.multiple_of(ci * chunk, chunk)
                sl = pl.ds(start, chunk)
                d = (p_ref[sl, :].astype(jnp.float32)
                     - t_ref[sl, :].astype(jnp.float32))
                if masked:
                    d = d * m_ref[sl, :].astype(jnp.float32)
                if mask_rows:
                    row_ids = (lax.broadcasted_iota(jnp.int32, (chunk, _LANES), 0)
                               + ci * chunk)
                    d = jnp.where(row_ids < valid, d, 0.0)
                sq = d * d
                # (chunk,128) -> (8,128): pure VPU adds, no cross-lane work.
                return acc + jnp.sum(
                    sq.reshape(chunk // _SUBLANES, _SUBLANES, _LANES), axis=0)

            part = lax.fori_loop(0, n_chunks, body,
                                 jnp.zeros((_SUBLANES, _LANES), jnp.float32))
            acc_ref[0] += part

        if needs_partial:
            is_full = (g + 1) * tile_rows <= rows

            @pl.when(is_full)
            def _():
                accumulate(False)            # steady-state fast path

            @pl.when(jnp.logical_not(is_full))
            def _():
                accumulate(True)             # last / redundant step only
        else:
            accumulate(False)

    return kernel


def masked_mse_loss(pred, target, mask=None, *, force_pallas=False):
    """Pallas equivalent of MaskedMSELoss.forward."""
    assert pred.ndim == target.ndim, "inconsistent dimensions"
    if mask is not None:
        assert mask.shape == target.shape, "Mask must be the same size as target"
        if mask.dtype == jnp.bool_:
            mask = mask.astype(jnp.int8)     # keep the DMA narrow; cast in VMEM

    n_elems = pred.size
    out_dtype = pred.dtype
    inputs = (pred, target) if mask is None else (pred, target, mask)

    def _jnp_ref():
        d = pred.astype(jnp.float32) - target.astype(jnp.float32)
        if mask is not None:
            d = d * mask.astype(jnp.float32)
        return jnp.mean(d * d).astype(out_dtype)

    rows = n_elems // _LANES                 # 128-aligned prefix goes to the kernel
    # Fallbacks: broadcastable-but-unequal shapes, tiny inputs, or no full row.
    if (pred.shape != target.shape
            or (n_elems < _MIN_PALLAS_ELEMS and not force_pallas)
            or rows == 0):
        return _jnp_ref()

    itemsizes = [int(jnp.dtype(a.dtype).itemsize) for a in inputs]
    # Sublane packing of the narrowest dtype: f32 -> 8, bf16 -> 16, int8 -> 32.
    row_align = _SUBLANES * max(1, 4 // min(itemsizes))
    rows_aligned = _round_up(rows, row_align)

    # Tile sized so that double-buffered input blocks fit the VMEM budget.
    budget_rows = _VMEM_INPUT_BUDGET // (2 * _LANES * sum(itemsizes))
    tile_rows = min(_MAX_TILE_ROWS, budget_rows, rows_aligned)
    if tile_rows >= _CHUNK_ROWS:
        tile_rows = (tile_rows // _CHUNK_ROWS) * _CHUNK_ROWS
        chunk = _CHUNK_ROWS
    else:
        tile_rows = _round_up(tile_rows, row_align)
        chunk = tile_rows

    total_tiles = pl.cdiv(rows, tile_rows)
    steps_per_core = pl.cdiv(total_tiles, _NUM_CORES)
    grid = (_NUM_CORES, steps_per_core)

    main = rows * _LANES
    slabs = [jnp.ravel(a)[:main].reshape(rows, _LANES) for a in inputs]

    def in_index(c, i):
        # Clamp so redundant steps re-read a valid tile (their contribution is
        # zeroed in-kernel); keeps every DMA in bounds.
        return (jnp.minimum(c * steps_per_core + i, total_tiles - 1), 0)

    in_specs = [pl.BlockSpec((tile_rows, _LANES), in_index) for _ in slabs]

    bytes_in = sum(int(a.size) * int(a.dtype.itemsize) for a in slabs)
    cost = pl.CostEstimate(
        flops=(4 if mask is not None else 3) * main,
        transcendentals=0,
        bytes_accessed=bytes_in + _NUM_CORES * _SUBLANES * _LANES * 4,
    )

    partials = pl.pallas_call(
        _make_kernel(mask is not None, rows, tile_rows, chunk,
                     steps_per_core, total_tiles),
        out_shape=jax.ShapeDtypeStruct((_NUM_CORES, _SUBLANES, _LANES),
                                       jnp.float32),
        grid=grid,
        in_specs=in_specs,
        # Per-core resident accumulator block; single lane-dense writeback per core.
        out_specs=pl.BlockSpec((1, _SUBLANES, _LANES), lambda c, i: (c, 0, 0)),
        compiler_params=pltpu.CompilerParams(
            dimension_semantics=("parallel", "arbitrary"),
            vmem_limit_bytes=_VMEM_LIMIT_BYTES),
        cost_estimate=cost,
    )(*slabs)

    total = jnp.sum(partials)

    # Ragged (<128-element) tail folded in on the host-side reduction.
    if main != n_elems:
        tails = [jnp.ravel(a)[main:].astype(jnp.float32) for a in inputs]
        dt = tails[0] - tails[1]
        if mask is not None:
            dt = dt * tails[2]
        total = total + jnp.sum(dt * dt)

    loss = total / jnp.float32(n_elems)
    return loss.astype(out_dtype)


if __name__ == "__main__":
    key = jax.random.PRNGKey(0)
    k1, k2, k3, k4, k5 = jax.random.split(key, 5)

    # 1) Small NCHW f32 with an int8 mask (forced through the Pallas path).
    shape = (2, 4, 16, 16)
    pred = jax.random.normal(k1, shape, dtype=jnp.float32)
    target = jax.random.normal(k2, shape, dtype=jnp.float32)
    mask = (jax.random.uniform(k3, shape) > 0.5).astype(jnp.int8)

    loss_masked = masked_mse_loss(pred, target, mask, force_pallas=True)
    jax.block_until_ready(loss_masked)
    ref_masked = jnp.mean(((pred - target) * mask.astype(jnp.float32)) ** 2)
    assert jnp.allclose(loss_masked, ref_masked, rtol=1e-5, atol=1e-6), (
        loss_masked, ref_masked)

    # 2) Unmasked variant (mask=None path).
    loss_plain = masked_mse_loss(pred, target, force_pallas=True)
    jax.block_until_ready(loss_plain)
    ref_plain = jnp.mean((pred - target) ** 2)
    assert jnp.allclose(loss_plain, ref_plain, rtol=1e-5, atol=1e-6), (
        loss_plain, ref_plain)

    # 3) bf16 + non-128-divisible size: in-kernel cast + ragged-tail handling.
    shape2 = (3, 5, 7, 11)
    p2 = jax.random.normal(k1, shape2, dtype=jnp.bfloat16)
    t2 = jax.random.normal(k2, shape2, dtype=jnp.bfloat16)
    loss2 = masked_mse_loss(p2, t2, force_pallas=True)
    jax.block_until_ready(loss2)
    ref2 = jnp.mean((p2.astype(jnp.float32) - t2.astype(jnp.float32)) ** 2)
    assert jnp.allclose(loss2.astype(jnp.float32), ref2, rtol=2e-2, atol=1e-3), (
        loss2, ref2)

    # 4) Larger masked case: both grid "cores" get real tiles and the last tile
    #    is partial (exercises the pl.when fast/masked split and the 2-D grid).
    shape3 = (2, 8, 384, 256)
    p3 = jax.random.normal(k4, shape3, dtype=jnp.float32)
    t3 = jax.random.normal(k5, shape3, dtype=jnp.float32)
    m3 = (jax.random.uniform(k3, shape3) > 0.5).astype(jnp.int8)
    loss3 = masked_mse_loss(p3, t3, m3)
    jax.block_until_ready(loss3)
    ref3 = jnp.mean(((p3 - t3) * m3.astype(jnp.float32)) ** 2)
    assert jnp.allclose(loss3, ref3, rtol=5e-4, atol=1e-6), (loss3, ref3)

    # 5) Small-input jnp fallback path.
    loss_fb = masked_mse_loss(pred[:1, :1, :2, :4], target[:1, :1, :2, :4])
    jax.block_until_ready(loss_fb)

    print("KERNEL_OK")
</pallas_src>

<mosaic_0001>
module attributes {stable_mosaic.version = 11 : i64} {
  func.func @kernel(%arg0: i32, %arg1: i32, %arg2: memref<32x128xf32, #tpu.memory_space<vmem>>, %arg3: memref<32x128xf32, #tpu.memory_space<vmem>>, %arg4: memref<32x128xi8, #tpu.memory_space<vmem>>, %arg5: memref<1x8x128xf32, #tpu.memory_space<vmem>>) attributes {dimension_semantics = [#tpu.dimension_semantics<parallel>, #tpu.dimension_semantics<arbitrary>], iteration_bounds = array<i64: 2, 1>, scalar_prefetch = 0 : i64, scratch_operands = 0 : i64, tpu.core_type = #tpu.core_type<tc>, window_params = [{transform_indices = @transform_0, window_bounds = array<i64: 32, 128>}, {transform_indices = @transform_1, window_bounds = array<i64: 32, 128>}, {transform_indices = @transform_2, window_bounds = array<i64: 32, 128>}, {transform_indices = @transform_3, window_bounds = array<i64: 1, 8, 128>}]} {
    %c1_i32 = arith.constant 1 : i32
    %0 = arith.muli %arg0, %c1_i32 : i32
    %1 = arith.addi %0, %arg1 : i32
    %c0_i32 = arith.constant 0 : i32
    %2 = arith.cmpi eq, %arg1, %c0_i32 : i32
    %3 = arith.extui %2 : i1 to i32
    %c0_i32_0 = arith.constant 0 : i32
    %4 = arith.cmpi ne, %3, %c0_i32_0 : i32
    scf.if %4 {
      %cst = arith.constant 0.000000e+00 : f32
      %13 = vector.broadcast %cst : f32 to vector<1x8x128xf32>
      %c0 = arith.constant 0 : index
      %c0_4 = arith.constant 0 : index
      %c0_5 = arith.constant 0 : index
      %14 = vector.load %arg5[%c0, %c0_4, %c0_5] : memref<1x8x128xf32, #tpu.memory_space<vmem>>, vector<1x8x128xf32>
      tpu.vector_store %arg5[%c0, %c0_4, %c0_5], %13 {strides = array<i32>} : memref<1x8x128xf32, #tpu.memory_space<vmem>>, vector<1x8x128xf32>,
    } else {
    }
    %c1_i32_1 = arith.constant 1 : i32
    %5 = arith.addi %1, %c1_i32_1 : i32
    %c32_i32 = arith.constant 32 : i32
    %6 = arith.muli %5, %c32_i32 : i32
    %c16_i32 = arith.constant 16 : i32
    %7 = arith.cmpi sle, %6, %c16_i32 : i32
    %8 = arith.extui %7 : i1 to i32
    %c0_i32_2 = arith.constant 0 : i32
    %9 = arith.cmpi ne, %8, %c0_i32_2 : i32
    scf.if %9 {
      %cst = arith.constant 0.000000e+00 : f32
      %13 = vector.broadcast %cst : f32 to vector<8x128xf32>
      %c0_i32_4 = arith.constant 0 : i32
      %c32_i32_5 = arith.constant 32 : i32
      %14 = arith.muli %c0_i32_4, %c32_i32_5 : i32
      %15 = tpu.assume_multiple %14, 32 : i32
      %16 = arith.index_cast %15 : i32 to index
      %c0 = arith.constant 0 : index
      %17 = vector.load %arg2[%16, %c0] : memref<32x128xf32, #tpu.memory_space<vmem>>, vector<32x128xf32>
      %18 = arith.index_cast %15 : i32 to index
      %c0_6 = arith.constant 0 : index
      %19 = vector.load %arg3[%18, %c0_6] : memref<32x128xf32, #tpu.memory_space<vmem>>, vector<32x128xf32>
      %20 = arith.subf %17, %19 : vector<32x128xf32>
      %21 = arith.index_cast %15 : i32 to index
      %c0_7 = arith.constant 0 : index
      %22 = vector.load %arg4[%21, %c0_7] : memref<32x128xi8, #tpu.memory_space<vmem>>, vector<32x128xi8>
      %23 = arith.sitofp %22 : vector<32x128xi8> to vector<32x128xf32>
      %24 = arith.mulf %20, %23 : vector<32x128xf32>
      %25 = arith.mulf %24, %24 : vector<32x128xf32>
      %26 = vector.shape_cast %25 : vector<32x128xf32> to vector<4x8x128xf32>
      %cst_8 = arith.constant dense<0.000000e+00> : vector<8x128xf32>
      %27 = vector.multi_reduction <add>, %26, %cst_8 [0] : vector<4x8x128xf32> to vector<8x128xf32>
      %28 = arith.addf %13, %27 : vector<8x128xf32>
      %c1_i32_9 = arith.constant 1 : i32
      %c0_10 = arith.constant 0 : index
      %c0_11 = arith.constant 0 : index
      %c0_12 = arith.constant 0 : index
      %29 = vector.load %arg5[%c0_10, %c0_11, %c0_12] : memref<1x8x128xf32, #tpu.memory_space<vmem>>, vector<1x8x128xf32>
      %30 = vector.shape_cast %29 : vector<1x8x128xf32> to vector<8x128xf32>
      %31 = arith.addf %30, %28 : vector<8x128xf32>
      %c0_13 = arith.constant 0 : index
      %c0_14 = arith.constant 0 : index
      %c0_15 = arith.constant 0 : index
      %32 = vector.load %arg5[%c0_13, %c0_14, %c0_15] : memref<1x8x128xf32, #tpu.memory_space<vmem>>, vector<1x8x128xf32>
      %33 = vector.shape_cast %32 : vector<1x8x128xf32> to vector<8x128xf32>
      %34 = vector.shape_cast %31 : vector<8x128xf32> to vector<1x8x128xf32>
      tpu.vector_store %arg5[%c0_13, %c0_14, %c0_15], %34 {strides = array<i32>} : memref<1x8x128xf32, #tpu.memory_space<vmem>>, vector<1x8x128xf32>,
    } else {
    }
    %true = arith.constant true
    %10 = arith.xori %7, %true : i1
    %11 = arith.extui %10 : i1 to i32
    %c0_i32_3 = arith.constant 0 : i32
    %12 = arith.cmpi ne, %11, %c0_i32_3 : i32
    scf.if %12 {
      %c32_i32_4 = arith.constant 32 : i32
      %13 = arith.muli %1, %c32_i32_4 : i32
      %c16_i32_5 = arith.constant 16 : i32
      %14 = arith.subi %c16_i32_5, %13 : i32
      %cst = arith.constant 0.000000e+00 : f32
      %15 = vector.broadcast %cst : f32 to vector<8x128xf32>
      %c0_i32_6 = arith.constant 0 : i32
      %c32_i32_7 = arith.constant 32 : i32
      %16 = arith.muli %c0_i32_6, %c32_i32_7 : i32
      %17 = tpu.assume_multiple %16, 32 : i32
      %18 = arith.index_cast %17 : i32 to index
      %c0 = arith.constant 0 : index
      %19 = vector.load %arg2[%18, %c0] : memref<32x128xf32, #tpu.memory_space<vmem>>, vector<32x128xf32>
      %20 = arith.index_cast %17 : i32 to index
      %c0_8 = arith.constant 0 : index
      %21 = vector.load %arg3[%20, %c0_8] : memref<32x128xf32, #tpu.memory_space<vmem>>, vector<32x128xf32>
      %22 = arith.subf %19, %21 : vector<32x128xf32>
      %23 = arith.index_cast %17 : i32 to index
      %c0_9 = arith.constant 0 : index
      %24 = vector.load %arg4[%23, %c0_9] : memref<32x128xi8, #tpu.memory_space<vmem>>, vector<32x128xi8>
      %25 = arith.sitofp %24 : vector<32x128xi8> to vector<32x128xf32>
      %26 = arith.mulf %22, %25 : vector<32x128xf32>
      %27 = tpu.iota {dimensions = array<i32: 0>} : vector<32x128xi32>
      %c32_i32_10 = arith.constant 32 : i32
      %28 = arith.muli %c0_i32_6, %c32_i32_10 : i32
      %29 = vector.broadcast %28 : i32 to vector<32x128xi32>
      %30 = arith.addi %27, %29 : vector<32x128xi32>
      %31 = vector.broadcast %14 : i32 to vector<32x128xi32>
      %32 = arith.cmpi slt, %30, %31 : vector<32x128xi32>
      %cst_11 = arith.constant 0.000000e+00 : f32
      %33 = vector.broadcast %cst_11 : f32 to vector<32x128xf32>
      %34 = arith.select %32, %26, %33 : vector<32x128xi1>, vector<32x128xf32>
      %35 = arith.mulf %34, %34 : vector<32x128xf32>
      %36 = vector.shape_cast %35 : vector<32x128xf32> to vector<4x8x128xf32>
      %cst_12 = arith.constant dense<0.000000e+00> : vector<8x128xf32>
      %37 = vector.multi_reduction <add>, %36, %cst_12 [0] : vector<4x8x128xf32> to vector<8x128xf32>
      %38 = arith.addf %15, %37 : vector<8x128xf32>
      %c1_i32_13 = arith.constant 1 : i32
      %c0_14 = arith.constant 0 : index
      %c0_15 = arith.constant 0 : index
      %c0_16 = arith.constant 0 : index
      %39 = vector.load %arg5[%c0_14, %c0_15, %c0_16] : memref<1x8x128xf32, #tpu.memory_space<vmem>>, vector<1x8x128xf32>
      %40 = vector.shape_cast %39 : vector<1x8x128xf32> to vector<8x128xf32>
      %41 = arith.addf %40, %38 : vector<8x128xf32>
      %c0_17 = arith.constant 0 : index
      %c0_18 = arith.constant 0 : index
      %c0_19 = arith.constant 0 : index
      %42 = vector.load %arg5[%c0_17, %c0_18, %c0_19] : memref<1x8x128xf32, #tpu.memory_space<vmem>>, vector<1x8x128xf32>
      %43 = vector.shape_cast %42 : vector<1x8x128xf32> to vector<8x128xf32>
      %44 = vector.shape_cast %41 : vector<8x128xf32> to vector<1x8x128xf32>
      tpu.vector_store %arg5[%c0_17, %c0_18, %c0_19], %44 {strides = array<i32>} : memref<1x8x128xf32, #tpu.memory_space<vmem>>, vector<1x8x128xf32>,
    } else {
    }
    return
  }
  func.func @transform_0(%arg0: i32, %arg1: i32) -> (i32, i32) {
    %c1_i32 = arith.constant 1 : i32
    %0 = arith.muli %arg0, %c1_i32 : i32
    %1 = arith.addi %0, %arg1 : i32
    %c0_i32 = arith.constant 0 : i32
    %2 = arith.minsi %1, %c0_i32 : i32
    %c0_i32_0 = arith.constant 0 : i32
    %c0_i32_1 = arith.constant 0 : i32
    return %2, %c0_i32_0 : i32, i32
  }
  func.func @transform_1(%arg0: i32, %arg1: i32) -> (i32, i32) {
    %c1_i32 = arith.constant 1 : i32
    %0 = arith.muli %arg0, %c1_i32 : i32
    %1 = arith.addi %0, %arg1 : i32
    %c0_i32 = arith.constant 0 : i32
    %2 = arith.minsi %1, %c0_i32 : i32
    %c0_i32_0 = arith.constant 0 : i32
    %c0_i32_1 = arith.constant 0 : i32
    return %2, %c0_i32_0 : i32, i32
  }
  func.func @transform_2(%arg0: i32, %arg1: i32) -> (i32, i32) {
    %c1_i32 = arith.constant 1 : i32
    %0 = arith.muli %arg0, %c1_i32 : i32
    %1 = arith.addi %0, %arg1 : i32
    %c0_i32 = arith.constant 0 : i32
    %2 = arith.minsi %1, %c0_i32 : i32
    %c0_i32_0 = arith.constant 0 : i32
    %c0_i32_1 = arith.constant 0 : i32
    return %2, %c0_i32_0 : i32, i32
  }
  func.func @transform_3(%arg0: i32, %arg1: i32) -> (i32, i32, i32) {
    %c0_i32 = arith.constant 0 : i32
    %c0_i32_0 = arith.constant 0 : i32
    %c0_i32_1 = arith.constant 0 : i32
    return %arg0, %c0_i32, %c0_i32_0 : i32, i32, i32
  }
}

</mosaic_0001>

<llo_original>
// kernel: tpu_custom_call.1
$region0: #{tpu_custom_call.1}
  #allocation0 [shape = 'u32[]', space=smem, size = 0x4, offset = 0x4, fixed_abs, tag = 'smem constant byte address 0x4 - core index']
  #allocation1 [shape = 'u32[144,128]{1,0:T(1,128)}', space=vmem, size = 0x12000, scoped, tag = 'internal scratch']
  %s0 = inlined_call_operand.hbm [shape: f32[16,128], index: 0, kind: input, shape index: {}]
  %s1 = inlined_call_operand.hbm [shape: f32[16,128], index: 1, kind: input, shape index: {}]
  %s2 = inlined_call_operand.vmem [shape: s8[16,128], index: 2, kind: input, shape index: {}]
  %s3 = inlined_call_operand.hbm [shape: f32[2,8,128], index: 3, kind: output, shape index: {}]
  %s4 = sld [smem:[#allocation0]]
  $region65: #{tpu_custom_call.1} parent=0
    _
  %s6 = ssub.s32 1, %s4
  %s7 = scalar_select 0, %s6, %s4
  $region1: #{tpu_custom_call.1} parent=0
    #allocation2 [shape = 'u8[32768]{0}', space=vmem, size = 0x8000, scoped, tag = 'input window, operand 0']
    #allocation3 [shape = 's32[2]{0}', space=sflag, size = 0x8, scoped, tag = 'scoped memory for tpu_custom_call.1']
    #allocation4 [shape = 's32[2]{0}', space=sflag, size = 0x8, scoped, tag = 'scoped memory for tpu_custom_call.1']
    #allocation5 [shape = 'u8[32768]{0}', space=vmem, size = 0x8000, scoped, tag = 'input window, operand 1']
    #allocation6 [shape = 's32[2]{0}', space=sflag, size = 0x8, scoped, tag = 'scoped memory for tpu_custom_call.1']
    #allocation7 [shape = 'u8[8192]{0}', space=vmem, size = 0x2000, scoped, tag = 'output window, operand 0']
    %8 = vsyncpa [#allocation3], 0
    %s9 = scalar_lea.sflag [#allocation3], 1
    %10 = vsyncpa %s9, 0
    %11 = vsyncpa [#allocation6], 0
    %s12 = scalar_lea.sflag [#allocation6], 1
    %13 = vsyncpa %s12, 0
    %14 = vsyncpa [#allocation4], 0
    %s15 = scalar_lea.sflag [#allocation4], 1
    %16 = vsyncpa %s15, 0
    loop: start=0, step=1, limit=4
    $region2: #{tpu_custom_call.1} parent=1 // loop_pre_header
      _
    $region3: #{tpu_custom_call.1} parent=1 // loop_header
      %s18 = sphi 0, %s22
      %p19 = scmp.ge.s32.totalorder %s18, 4
      %s25 = sphi 0, %s37
      %s26 = sphi 0, %s33
      %s27 = sphi 0, %s25
      %s28 = sphi 0, %s26
      %s29 = sphi 0, %s27
      %s30 = sphi 0, %s28
      %s46 = sphi 0, %s48
      %s49 = sphi 0, %s46
      %s50 = sphi 0, %s49
      %s66 = sphi 0, %s50
      %s78 = sphi 0, %s80
      %s81 = sphi 0, %s78
      %s82 = sphi 0, %s81
      %s98 = sphi 0, %s82
      %s110 = sphi 0, %s112
      %s113 = sphi 0, %s110
      %s114 = sphi 0, %s113
      %s130 = sphi 0, %s114
      %s136 = sphi 0, %s138
      %s139 = sphi 0, %s136
      %s140 = sphi 0, %s139
      %s156 = sphi 0, %s140
    $region4: #{tpu_custom_call.1} parent=1 // loop_header_branch
      %21 = sbr.rel (%p19) target = $region8
    $region5: #{tpu_custom_call.1} parent=1 // loop_body
      %s23 = ssub.s32 %s18, 1
      %s24 = ssub.s32 %s18, 2
      %s31 = sadd.s32 1, %s26
      %p32 = scmp.ge.s32.totalorder %s31, 1
      %s33 = scalar_select %p32, 0, %s31
      %s34 = sadd.s32 1, %s25
      %s35 = scalar_select %p32, %s34, %s25
      %p36 = scmp.ge.s32.totalorder %s35, 2
      %s37 = scalar_select %p36, 0, %s35
      %s38 = sadd.s32 %s25, %s26
      %p39 = scmp.lt.s32.totalorder %s38, 0
      %s40 = scalar_select %p39, %s38, 0
      %s41 = sadd.s32 %s37, %s33
      %p42 = scmp.lt.s32.totalorder %s41, 0
      %s43 = scalar_select %p42, %s41, 0
      %s44 = ssub.s32 %s40, %s43
      %p45 = scmp.eq.s32.totalorder %s44, 0
      %s47 = sadd.s32 %s46, 1
      %s48 = scalar_select %p45, %s46, %s47
      %p51 = pneg %p45
      %p52 = scmp.eq.s32.totalorder %s18, 1
      %p53 = por %p51, %p52
      %p54 = scmp.ne.s32.totalorder %s46, %s49
      %p55 = scmp.eq.s32.totalorder %s18, 0
      %p56 = por %p54, %p55
      %p57 = scmp.ne.s32.totalorder %s46, %s49
      %p58 = scmp.eq.s32.totalorder %s23, 1
      %p59 = por %p57, %p58
      %p60 = scmp.ne.s32.totalorder %s49, %s50
      %p61 = scmp.eq.s32.totalorder %s23, 0
      %p62 = por %p60, %p61
      %p63 = scmp.ne.s32.totalorder %s49, %s50
      %p64 = scmp.eq.s32.totalorder %s24, 1
      %p65 = por %p63, %p64
      %p67 = scmp.ne.s32.totalorder %s50, %s66
      %p68 = scmp.eq.s32.totalorder %s24, 0
      %p69 = por %p67, %p68
      %s70 = sadd.s32 %s25, %s26
      %p71 = scmp.lt.s32.totalorder %s70, 0
      %s72 = scalar_select %p71, %s70, 0
      %s73 = sadd.s32 %s37, %s33
      %p74 = scmp.lt.s32.totalorder %s73, 0
      %s75 = scalar_select %p74, %s73, 0
      %s76 = ssub.s32 %s72, %s75
      %p77 = scmp.eq.s32.totalorder %s76, 0
      %s79 = sadd.s32 %s78, 1
      %s80 = scalar_select %p77, %s78, %s79
      %p83 = pneg %p77
      %p84 = scmp.eq.s32.totalorder %s18, 1
      %p85 = por %p83, %p84
      %p86 = scmp.ne.s32.totalorder %s78, %s81
      %p87 = scmp.eq.s32.totalorder %s18, 0
      %p88 = por %p86, %p87
      %p89 = scmp.ne.s32.totalorder %s78, %s81
      %p90 = scmp.eq.s32.totalorder %s23, 1
      %p91 = por %p89, %p90
      %p92 = scmp.ne.s32.totalorder %s81, %s82
      %p93 = scmp.eq.s32.totalorder %s23, 0
      %p94 = por %p92, %p93
      %p95 = scmp.ne.s32.totalorder %s81, %s82
      %p96 = scmp.eq.s32.totalorder %s24, 1
      %p97 = por %p95, %p96
      %p99 = scmp.ne.s32.totalorder %s82, %s98
      %p100 = scmp.eq.s32.totalorder %s24, 0
      %p101 = por %p99, %p100
      %s102 = sadd.s32 %s25, %s26
      %p103 = scmp.lt.s32.totalorder %s102, 0
      %s104 = scalar_select %p103, %s102, 0
      %s105 = sadd.s32 %s37, %s33
      %p106 = scmp.lt.s32.totalorder %s105, 0
      %s107 = scalar_select %p106, %s105, 0
      %s108 = ssub.s32 %s104, %s107
      %p109 = scmp.eq.s32.totalorder %s108, 0
      %s111 = sadd.s32 %s110, 1
      %s112 = scalar_select %p109, %s110, %s111
      %p115 = pneg %p109
      %p116 = scmp.eq.s32.totalorder %s18, 1
      %p117 = por %p115, %p116
      %p118 = scmp.ne.s32.totalorder %s110, %s113
      %p119 = scmp.eq.s32.totalorder %s18, 0
      %p120 = por %p118, %p119
      %p121 = scmp.ne.s32.totalorder %s110, %s113
      %p122 = scmp.eq.s32.totalorder %s23, 1
      %p123 = por %p121, %p122
      %p124 = scmp.ne.s32.totalorder %s113, %s114
      %p125 = scmp.eq.s32.totalorder %s23, 0
      %p126 = por %p124, %p125
      %p127 = scmp.ne.s32.totalorder %s113, %s114
      %p128 = scmp.eq.s32.totalorder %s24, 1
      %p129 = por %p127, %p128
      %p131 = scmp.ne.s32.totalorder %s114, %s130
      %p132 = scmp.eq.s32.totalorder %s24, 0
      %p133 = por %p131, %p132
      %s134 = ssub.s32 %s25, %s37
      %p135 = scmp.eq.s32.totalorder %s134, 0
      %s137 = sadd.s32 %s136, 1
      %s138 = scalar_select %p135, %s136, %s137
      %p141 = pneg %p135
      %p142 = scmp.eq.s32.totalorder %s18, 1
      %p143 = por %p141, %p142
      %p144 = scmp.ne.s32.totalorder %s136, %s139
      %p145 = scmp.eq.s32.totalorder %s18, 0
      %p146 = por %p144, %p145
      %p147 = scmp.ne.s32.totalorder %s136, %s139
      %p148 = scmp.eq.s32.totalorder %s23, 1
      %p149 = por %p147, %p148
      %p150 = scmp.ne.s32.totalorder %s139, %s140
      %p151 = scmp.eq.s32.totalorder %s23, 0
      %p152 = por %p150, %p151
      %p153 = scmp.ne.s32.totalorder %s139, %s140
      %p154 = scmp.eq.s32.totalorder %s24, 1
      %p155 = por %p153, %p154
      %p157 = scmp.ne.s32.totalorder %s140, %s156
      %p158 = scmp.eq.s32.totalorder %s24, 0
      %p159 = por %p157, %p158
      %p160 = scmp.le.s32.totalorder 1, %s18
      %p161 = scmp.lt.s32.totalorder %s18, 3
      %p162 = pnand %p160, %p161
      %p163 = pneg %p162
      // Predicated region
      $region9: #{tpu_custom_call.1} parent=5 // pred_check
        _
      $region10: #{tpu_custom_call.1} parent=5 // pred_check_branch
        %165 = sbr.rel (%p162) target = $region12
      $region11: #{tpu_custom_call.1} parent=5 // pred_region
        %s166 = ssub.s32 %s18, 1
      $region12: #{tpu_custom_call.1} parent=5 // pred_fallthru
        _
      %p167 = scmp.lt.s32.totalorder %s18, 2
      // Predicated region
      $region13: #{tpu_custom_call.1} parent=5 // pred_check
        %p168 = pneg %p167
      $region14: #{tpu_custom_call.1} parent=5 // pred_check_branch
        %170 = sbr.rel (%p168) target = $region16
      $region15: #{tpu_custom_call.1} parent=5 // pred_region
        // Predicated region
        $region17: #{tpu_custom_call.1} parent=15 // pred_check
          %p171 = pneg %p56
        $region18: #{tpu_custom_call.1} parent=15 // pred_check_branch
          %173 = sbr.rel (%p171) target = $region20
        $region19: #{tpu_custom_call.1} parent=15 // pred_region
          %s174 = sand.u32 %s46, 1
          %s175 = scalar_lea.sflag [#allocation3], %s174
          %s176 = sand.u32 %s46, 1
          %s177 = smul.addr %s176, 32
          %s178 = scalar_lea.vmem [#allocation2], %s177
          %s179 = sadd.s32 %s25, %s26
          %p180 = scmp.lt.s32.totalorder %s179, 0
          %s181 = scalar_select %p180, %s179, 0
          %s182 = smul.u32 4, %s181
          %s183 = ssub.s32 2, %s182
          %s184 = smul.u32 128, %s183
          %s186 = ssub.s32 512, %s184
          %187 = vsyncadd %s175, %s186
          %p188 = scmp.ne.s32.totalorder 0, %s184
          %s189 = smul.addr %s182, 128
          %s190 = scalar_lea.hbm %s0, %s189
          %s191 = smul.u32 8, %s183
          %s192 = sshll.u32 %s178, 4
          %s193 = int_to_ptr.vmem [resolvable:$true] %s192
          %s194 = sshll.u32 %s191, 4
          %198 = dma.hbm_to_vmem [thread:$0]  (%p188), %s190, %s194, %s193, %s175, 128, 128, 8
        $region20: #{tpu_custom_call.1} parent=15 // pred_fallthru
          _
        // Predicated region
        $region21: #{tpu_custom_call.1} parent=15 // pred_check
          %p199 = pneg %p88
        $region22: #{tpu_custom_call.1} parent=15 // pred_check_branch
          %201 = sbr.rel (%p199) target = $region24
        $region23: #{tpu_custom_call.1} parent=15 // pred_region
          %s202 = sand.u32 %s78, 1
          %s203 = scalar_lea.sflag [#allocation6], %s202
          %s204 = sand.u32 %s78, 1
          %s205 = smul.addr %s204, 32
          %s206 = scalar_lea.vmem [#allocation5], %s205
          %s207 = sadd.s32 %s25, %s26
          %p208 = scmp.lt.s32.totalorder %s207, 0
          %s209 = scalar_select %p208, %s207, 0
          %s210 = smul.u32 4, %s209
          %s211 = ssub.s32 2, %s210
          %s212 = smul.u32 128, %s211
          %s214 = ssub.s32 512, %s212
          %215 = vsyncadd %s203, %s214
          %p216 = scmp.ne.s32.totalorder 0, %s212
          %s217 = smul.addr %s210, 128
          %s218 = scalar_lea.hbm %s1, %s217
          %s219 = smul.u32 8, %s211
          %s220 = sshll.u32 %s206, 4
          %s221 = int_to_ptr.vmem [resolvable:$true] %s220
          %s222 = sshll.u32 %s219, 4
          %226 = dma.hbm_to_vmem [thread:$0]  (%p216), %s218, %s222, %s221, %s203, 128, 128, 8
        $region24: #{tpu_custom_call.1} parent=15 // pred_fallthru
          _
        // Predicated region
        $region25: #{tpu_custom_call.1} parent=15 // pred_check
          %p227 = pneg %p120
        $region26: #{tpu_custom_call.1} parent=15 // pred_check_branch
          %229 = sbr.rel (%p227) target = $region28
        $region27: #{tpu_custom_call.1} parent=15 // pred_region
          %s230 = sadd.s32 %s25, %s26
          %p231 = scmp.lt.s32.totalorder %s230, 0
          %s232 = scalar_select %p231, %s230, 0
          %s233 = smul.u32 4, %s232
          %s234 = ssub.s32 2, %s233
          %s235 = smul.u32 32, %s234
          %p236 = scmp.lt.s32.totalorder %s233, 1
          %s237 = scalar_select %p236, %s233, 1
          %s238 = smul.addr %s237, 2
          %s239 = scalar_lea.vmem %s2, %s238
          %s240 = sadd.s32 %s25, %s26
          %p241 = scmp.lt.s32.totalorder %s240, 0
          %s242 = scalar_select %p241, %s240, 0
          %s243 = smul.u32 4, %s242
          %s244 = ssub.s32 2, %s243
          %s245 = smul.u32 32, %s244
        $region28: #{tpu_custom_call.1} parent=15 // pred_fallthru
          _
      $region16: #{tpu_custom_call.1} parent=5 // pred_fallthru
        _
      %p246 = scmp.le.s32.totalorder 1, %s18
      %p247 = scmp.lt.s32.totalorder %s18, 3
      %p248 = pnand %p246, %p247
      %p249 = pneg %p248
      // Predicated region
      $region29: #{tpu_custom_call.1} parent=5 // pred_check
        _
      $region30: #{tpu_custom_call.1} parent=5 // pred_check_branch
        %251 = sbr.rel (%p248) target = $region32
      $region31: #{tpu_custom_call.1} parent=5 // pred_region
        %s252 = ssub.s32 %s18, 1
        %s253 = sand.u32 %s49, 1
        %s254 = scalar_lea.sflag [#allocation3], %s253
        %s255 = sand.u32 %s49, 1
        %s256 = smul.addr %s255, 32
        %s257 = scalar_lea.vmem [#allocation2], %s256
        // Predicated region
        $region33: #{tpu_custom_call.1} parent=31 // pred_check
          %p258 = pneg %p62
        $region34: #{tpu_custom_call.1} parent=31 // pred_check_branch
          %260 = sbr.rel (%p258) target = $region36
        $region35: #{tpu_custom_call.1} parent=31 // pred_region
          %261 = dma.done %s254, 512
        $region36: #{tpu_custom_call.1} parent=31 // pred_fallthru
          _
        %s262 = sand.u32 %s81, 1
        %s263 = scalar_lea.sflag [#allocation6], %s262
        %s264 = sand.u32 %s81, 1
        %s265 = smul.addr %s264, 32
        %s266 = scalar_lea.vmem [#allocation5], %s265
        // Predicated region
        $region37: #{tpu_custom_call.1} parent=31 // pred_check
          %p267 = pneg %p94
        $region38: #{tpu_custom_call.1} parent=31 // pred_check_branch
          %269 = sbr.rel (%p267) target = $region40
        $region39: #{tpu_custom_call.1} parent=31 // pred_region
          %270 = dma.done %s263, 512
        $region40: #{tpu_custom_call.1} parent=31 // pred_fallthru
          _
        %s271 = sand.u32 %s49, 1
        %s272 = scalar_lea.sflag [#allocation3], %s271
        %s273 = sand.u32 %s49, 1
        %s274 = smul.addr %s273, 32
        %s275 = scalar_lea.vmem [#allocation2], %s274
        %p276 = pneg %p62
        %p277 = pneg %p59
        %s278 = sand.u32 %s81, 1
        %s279 = scalar_lea.sflag [#allocation6], %s278
        %s280 = sand.u32 %s81, 1
        %s281 = smul.addr %s280, 32
        %s282 = scalar_lea.vmem [#allocation5], %s281
        %p283 = pneg %p94
        %p284 = pneg %p91
        %s285 = sadd.s32 %s27, %s28
        %p286 = scmp.lt.s32.totalorder %s285, 0
        %s287 = scalar_select %p286, %s285, 0
        %s288 = smul.u32 4, %s287
        %s289 = ssub.s32 2, %s288
        %s290 = smul.u32 32, %s289
        %p291 = scmp.lt.s32.totalorder %s288, 1
        %s292 = scalar_select %p291, %s288, 1
        %s293 = smul.addr %s292, 2
        %s294 = scalar_lea.vmem %s2, %s293
        %p295 = pneg %p126
        %p296 = pneg %p123
        %p297 = pneg %p152
        %p298 = pneg %p149
        %s299 = sand.u32 %s139, 1
        %s300 = scalar_lea.sflag [#allocation4], %s299
        %s301 = sand.u32 %s139, 1
        %s302 = smul.addr %s301, 8
        %s303 = scalar_lea.vmem [#allocation7], %s302
        %s304 = sadd.s32 %s27, %s28
        %p305 = scmp.lt.s32.totalorder %s304, 0
        %s306 = scalar_select %p305, %s304, 0
        %s307 = smul.u32 4, %s306
        %s308 = ssub.s32 2, %s307
        %s309 = smul.u32 128, %s308
        %s310 = sadd.s32 %s27, %s28
        %p311 = scmp.lt.s32.totalorder %s310, 0
        %s312 = scalar_select %p311, %s310, 0
        %s313 = smul.u32 4, %s312
        %s314 = ssub.s32 2, %s313
        %s315 = smul.u32 128, %s314
        %s316 = sadd.s32 %s27, %s28
        %p317 = scmp.lt.s32.totalorder %s316, 0
        %s318 = scalar_select %p317, %s316, 0
        %s319 = smul.u32 4, %s318
        %s320 = ssub.s32 2, %s319
        %s321 = smul.u32 32, %s320
        %p322 = scmp.lt.s32.totalorder %s319, 1
        %s323 = scalar_select %p322, %s319, 1
        %s324 = smul.addr %s323, 2
        %s325 = scalar_lea.vmem %s2, %s324
        %s326 = sadd.s32 %s27, %s28
        %p327 = scmp.lt.s32.totalorder %s326, 0
        %s328 = scalar_select %p327, %s326, 0
        %s329 = smul.u32 4, %s328
        %s330 = ssub.s32 2, %s329
        %s331 = smul.u32 32, %s330
        %s332 = sadd.s32 %s27, %s28
        %p333 = scmp.eq.s32.totalorder %s28, 0
        // Predicated region
        $region41: #{tpu_custom_call.1} parent=31 // pred_check
          %p334 = pneg %p333
        $region42: #{tpu_custom_call.1} parent=31 // pred_check_branch
          %336 = sbr.rel (%p334) target = $region44
        $region43: #{tpu_custom_call.1} parent=31 // pred_region
          %337 = vst [vmem:[%s303] sm:$0xff] 0.0
        $region44: #{tpu_custom_call.1} parent=31 // pred_fallthru
          _
        %s338 = sadd.s32 %s332, 1
        %s339 = smul.u32 %s338, 32
        %p340 = scmp.le.s32.totalorder %s339, 16
        // Predicated region
        $region45: #{tpu_custom_call.1} parent=31 // pred_check
          %p341 = pneg %p340
        $region46: #{tpu_custom_call.1} parent=31 // pred_check_branch
          %343 = sbr.rel (%p341) target = $region48
        $region47: #{tpu_custom_call.1} parent=31 // pred_region
          %v344 = vld [vmem:[%s257] sm:$0xff]
          %v345 = vld [vmem:[%s257 + $0x8] sm:$0xff]
          %v346 = vld [vmem:[%s257 + $0x10] sm:$0xff]
          %v347 = vld [vmem:[%s257 + $0x18] sm:$0xff]
          %v348 = vld [vmem:[%s266] sm:$0xff]
          %v349 = vld [vmem:[%s266 + $0x8] sm:$0xff]
          %v350 = vld [vmem:[%s266 + $0x10] sm:$0xff]
          %v351 = vld [vmem:[%s266 + $0x18] sm:$0xff]
          %v352 = vsub.f32 %v344, %v348
          %v353 = vsub.f32 %v345, %v349
          %v354 = vsub.f32 %v346, %v350
          %v355 = vsub.f32 %v347, %v351
          %v356 = vld [vmem:[%s325] sm:$0x3]
          %v357 = vld [vmem:[%s325 + $0x2] sm:$0x3]
          %v358 = vld [vmem:[%s325 + $0x4] sm:$0x3]
          %v359 = vld [vmem:[%s325 + $0x6] sm:$0x3]
          %v360 = vunpack.c.0.s8 %v356
          %v361 = vunpack.c.0.s8 %v357
          %v362 = vunpack.c.0.s8 %v358
          %v363 = vunpack.c.0.s8 %v359
          %v364 = vcvt.s32.f32 %v360
          %v365 = vcvt.s32.f32 %v361
          %v366 = vcvt.s32.f32 %v362
          %v367 = vcvt.s32.f32 %v363
          %v368 = vmul.f32 %v352, %v364
          %v369 = vmul.f32 %v353, %v365
          %v370 = vmul.f32 %v354, %v366
          %v371 = vmul.f32 %v355, %v367
          %v372 = vmul.f32 %v368, %v368
          %v373 = vmul.f32 %v369, %v369
          %v374 = vmul.f32 %v370, %v370
          %v375 = vmul.f32 %v371, %v371
          %v376 = vadd.f32 %v372, %v373
          %v377 = vadd.f32 %v376, %v374
          %v378 = vadd.f32 %v377, %v375
          %v379 = vadd.f32 %v378, 0.0
          %v380 = vld [vmem:[%s303] sm:$0xff]
          %v381 = vadd.f32 %v380, %v379
          %382 = vst [vmem:[%s303] sm:$0xff] %v381
        $region48: #{tpu_custom_call.1} parent=31 // pred_fallthru
          _
        %p383 = scmp.gt.s32.totalorder %s339, 16
        // Predicated region
        $region49: #{tpu_custom_call.1} parent=31 // pred_check
          %p384 = pneg %p383
        $region50: #{tpu_custom_call.1} parent=31 // pred_check_branch
          %386 = sbr.rel (%p384) target = $region52
        $region51: #{tpu_custom_call.1} parent=31 // pred_region
          %s387 = smul.u32 %s332, 32
          %s388 = ssub.s32 16, %s387
          %v389 = vld [vmem:[%s257] sm:$0xff]
          %v390 = vld [vmem:[%s257 + $0x8] sm:$0xff]
          %v391 = vld [vmem:[%s257 + $0x10] sm:$0xff]
          %v392 = vld [vmem:[%s257 + $0x18] sm:$0xff]
          %v393 = vld [vmem:[%s266] sm:$0xff]
          %v394 = vld [vmem:[%s266 + $0x8] sm:$0xff]
          %v395 = vld [vmem:[%s266 + $0x10] sm:$0xff]
          %v396 = vld [vmem:[%s266 + $0x18] sm:$0xff]
          %v397 = vsub.f32 %v389, %v393
          %v398 = vsub.f32 %v390, %v394
          %v399 = vsub.f32 %v391, %v395
          %v400 = vsub.f32 %v392, %v396
          %v401 = vld [vmem:[%s325] sm:$0x3]
          %v402 = vld [vmem:[%s325 + $0x2] sm:$0x3]
          %v403 = vld [vmem:[%s325 + $0x4] sm:$0x3]
          %v404 = vld [vmem:[%s325 + $0x6] sm:$0x3]
          %v405 = vunpack.c.0.s8 %v401
          %v406 = vunpack.c.0.s8 %v402
          %v407 = vunpack.c.0.s8 %v403
          %v408 = vunpack.c.0.s8 %v404
          %v409 = vcvt.s32.f32 %v405
          %v410 = vcvt.s32.f32 %v406
          %v411 = vcvt.s32.f32 %v407
          %v412 = vcvt.s32.f32 %v408
          %v413 = vmul.f32 %v397, %v409
          %v414 = vmul.f32 %v398, %v410
          %v415 = vmul.f32 %v399, %v411
          %v416 = vmul.f32 %v400, %v412
          %v417 = vlaneseq
          %v418 = vshrl.u32 %v417, 7
          %v419 = vadd.s32 %v418, 8
          %v420 = vadd.s32 %v418, 16
          %v421 = vadd.s32 %v418, 24
          %v422 = vstv %s388
          %vm423 = vcmp.lt.s32.totalorder %v418, %v422
          %vm424 = vcmp.lt.s32.totalorder %v419, %v422
          %vm425 = vcmp.lt.s32.totalorder %v420, %v422
          %vm426 = vcmp.lt.s32.totalorder %v421, %v422
          %v427 = vsel %vm423, %v413, 0.0
          %v428 = vsel %vm424, %v414, 0.0
          %v429 = vsel %vm425, %v415, 0.0
          %v430 = vsel %vm426, %v416, 0.0
          %v431 = vmul.f32 %v427, %v427
          %v432 = vmul.f32 %v428, %v428
          %v433 = vmul.f32 %v429, %v429
          %v434 = vmul.f32 %v430, %v430
          %v435 = vadd.f32 %v431, %v432
          %v436 = vadd.f32 %v435, %v433
          %v437 = vadd.f32 %v436, %v434
          %v438 = vadd.f32 %v437, 0.0
          %v439 = vld [vmem:[%s303] sm:$0xff]
          %v440 = vadd.f32 %v439, %v438
          %441 = vst [vmem:[%s303] sm:$0xff] %v440
        $region52: #{tpu_custom_call.1} parent=31 // pred_fallthru
          _
        %s442 = sand.u32 %s139, 1
        %s443 = scalar_lea.sflag [#allocation4], %s442
        %s444 = sand.u32 %s139, 1
        %s445 = smul.addr %s444, 8
        %s446 = scalar_lea.vmem [#allocation7], %s445
        // Predicated region
        $region53: #{tpu_custom_call.1} parent=31 // pred_check
          %p447 = pneg %p149
        $region54: #{tpu_custom_call.1} parent=31 // pred_check_branch
          %449 = sbr.rel (%p447) target = $region56
        $region55: #{tpu_custom_call.1} parent=31 // pred_region
          %s451 = ssub.s32 128, 128
          %452 = vsyncadd %s443, %s451
          %s453 = smul.addr %s27, 128
          %s454 = scalar_lea.hbm %s3, %s453
          %s456 = sshll.u32 %s446, 4
          %s457 = int_to_ptr.vmem [resolvable:$true] %s456
          %459 = dma.vmem_to_hbm [thread:$0]  %s457, 128, %s454, %s443
        $region56: #{tpu_custom_call.1} parent=31 // pred_fallthru
          _
      $region32: #{tpu_custom_call.1} parent=5 // pred_fallthru
        _
      %p460 = scmp.le.s32.totalorder 2, %s18
      // Predicated region
      $region57: #{tpu_custom_call.1} parent=5 // pred_check
        %p461 = pneg %p460
      $region58: #{tpu_custom_call.1} parent=5 // pred_check_branch
        %463 = sbr.rel (%p461) target = $region60
      $region59: #{tpu_custom_call.1} parent=5 // pred_region
        %s464 = ssub.s32 %s18, 2
        // Predicated region
        $region61: #{tpu_custom_call.1} parent=59 // pred_check
          %p465 = pneg %p155
        $region62: #{tpu_custom_call.1} parent=59 // pred_check_branch
          %467 = sbr.rel (%p465) target = $region64
        $region63: #{tpu_custom_call.1} parent=59 // pred_region
          %s468 = sand.u32 %s140, 1
          %s469 = scalar_lea.sflag [#allocation4], %s468
          %s470 = sand.u32 %s140, 1
          %s471 = smul.addr %s470, 8
          %s472 = scalar_lea.vmem [#allocation7], %s471
          %473 = dma.done %s469, 128
        $region64: #{tpu_custom_call.1} parent=59 // pred_fallthru
          _
      $region60: #{tpu_custom_call.1} parent=5 // pred_fallthru
        _
    $region6: #{tpu_custom_call.1} parent=1 // loop_footer
      %s22 = sadd.s32 1, %s18
    $region7: #{tpu_custom_call.1} parent=1 // loop_footer_branch
      %17 = sbr.rel target = $region3
    $region8: #{tpu_custom_call.1} parent=1 // loop_exit
      _
    %474 = vsyncpa [#allocation3], 1
    %s475 = scalar_lea.sflag [#allocation3], 1
    %476 = vsyncpa %s475, 1
    %477 = vsyncpa [#allocation6], 1
    %s478 = scalar_lea.sflag [#allocation6], 1
    %479 = vsyncpa %s478, 1
    %480 = vsyncpa [#allocation4], 1
    %s481 = scalar_lea.sflag [#allocation4], 1
    %482 = vsyncpa %s481, 1

</llo_original>
